<compile_context>
chip_gen: v6e
topology: v6e:2x2x1
jax: 0.10.0
libtpu: 0.0.40
codegen_flags: <defaults>
</compile_context>

<pallas_src>
import functools

import jax
import jax.numpy as jnp
from jax.experimental import pallas as pl
from jax.experimental.pallas import tpu as pltpu

LANES = 128
MAX_BLOCK_ROWS = 4096  # 4096 x 128 f32 = 2 MiB/block/stream; 2 streams x 2 bufs = 8 MiB VMEM


def _round_up(x: int, m: int) -> int:
    return ((x + m - 1) // m) * m


def _dice_partial_kernel(x_ref, t_ref, acc_ref, *, n_valid, block_rows,
                         inner_steps, has_pad):
    """Accumulates per-lane partial sums of (sigmoid(x)*t, sigmoid(x), t)."""
    outer = pl.program_id(0)
    inner = pl.program_id(1)

    @pl.when(inner == 0)
    def _():
        acc_ref[...] = jnp.zeros_like(acc_ref)

    x = x_ref[...].astype(jnp.float32)
    t = t_ref[...].astype(jnp.float32)
    s = jax.nn.sigmoid(x)

    if has_pad:
        # Padding lives only at the tail of the flattened array; zero-padded
        # targets already make t and s*t correct, so only sum(s) needs a mask.
        block_idx = outer * inner_steps + inner
        base = block_idx * (block_rows * LANES)
        row = jax.lax.broadcasted_iota(jnp.int32, (block_rows, LANES), 0)
        col = jax.lax.broadcasted_iota(jnp.int32, (block_rows, LANES), 1)
        gidx = base + row * LANES + col
        s = jnp.where(gidx < n_valid, s, 0.0)

    st = s * t
    # VPU-only partial accumulation into (8, 128) vreg-shaped lanes; the single
    # cross-lane reduce happens outside the kernel.
    acc_ref[0, 0, :, :] += st.reshape(-1, 8, LANES).sum(axis=0)
    acc_ref[0, 1, :, :] += s.reshape(-1, 8, LANES).sum(axis=0)
    acc_ref[0, 2, :, :] += t.reshape(-1, 8, LANES).sum(axis=0)


def dice_loss(inputs, targets, smooth: float = 1.0):
    """1 - dice_score(sigmoid(inputs), targets); full reduction over all elems."""
    assert inputs.shape == targets.shape

    n = int(inputs.size)
    x_flat = inputs.reshape(-1)      # keep native dtype (bf16 stays bf16)
    t_flat = targets.reshape(-1)

    rows = pl.cdiv(n, LANES)
    block_rows = min(MAX_BLOCK_ROWS, _round_up(rows, 8))
    total_blocks = pl.cdiv(rows, block_rows)

    # Shard the reduction across TensorCores (2x on v7x, harmless on v5e/v6e).
    num_shards = 2 if total_blocks >= 2 else 1
    inner_steps = pl.cdiv(total_blocks, num_shards)
    padded_rows = num_shards * inner_steps * block_rows
    n_pad = padded_rows * LANES
    pad = n_pad - n

    if pad > 0:
        # Only pay the full-array copy when the input isn't already aligned.
        x_flat = jnp.pad(x_flat, (0, pad))
        t_flat = jnp.pad(t_flat, (0, pad))

    x2 = x_flat.reshape(padded_rows, LANES)
    t2 = t_flat.reshape(padded_rows, LANES)

    in_block = pl.BlockSpec((block_rows, LANES),
                            lambda o, i: (o * inner_steps + i, 0))

    in_bytes = (x2.size * x2.dtype.itemsize) + (t2.size * t2.dtype.itemsize)
    out_bytes = num_shards * 3 * 8 * LANES * 4

    partials = pl.pallas_call(
        functools.partial(
            _dice_partial_kernel,
            n_valid=n,
            block_rows=block_rows,
            inner_steps=inner_steps,
            has_pad=(pad > 0),
        ),
        out_shape=jax.ShapeDtypeStruct((num_shards, 3, 8, LANES), jnp.float32),
        grid_spec=pltpu.PrefetchScalarGridSpec(
            num_scalar_prefetch=0,
            grid=(num_shards, inner_steps),
            in_specs=[in_block, in_block],
            out_specs=pl.BlockSpec((1, 3, 8, LANES),
                                   lambda o, i: (o, 0, 0, 0)),
        ),
        compiler_params=pltpu.CompilerParams(
            dimension_semantics=("parallel", "arbitrary")),
        cost_estimate=pl.CostEstimate(
            flops=5 * n,
            transcendentals=n,
            bytes_accessed=in_bytes + out_bytes),
    )(x2, t2)

    # Tiny final combine (a few KiB) in plain JAX.
    sums = jnp.sum(partials, axis=(0, 2, 3))  # (3,) = [sum(s*t), sum(s), sum(t)]
    inter, s_sum, t_sum = sums[0], sums[1], sums[2]
    dice = (2.0 * inter + float(smooth)) / (s_sum + t_sum + float(smooth))
    return 1.0 - dice


def dice_loss_ref(inputs, targets, smooth: float = 1.0):
    s = jax.nn.sigmoid(inputs.astype(jnp.float32))
    t = targets.astype(jnp.float32)
    inter = jnp.sum(s * t)
    dice = (2.0 * inter + smooth) / (jnp.sum(s) + jnp.sum(t) + smooth)
    return 1.0 - dice


if __name__ == "__main__":
    key = jax.random.PRNGKey(0)
    k1, k2 = jax.random.split(key)

    # Small segmentation-style shapes: logits and binary targets, NCHW.
    shape = (2, 4, 16, 16)
    inputs = jax.random.normal(k1, shape, dtype=jnp.float32)
    targets = (jax.random.uniform(k2, shape) > 0.5).astype(jnp.float32)

    loss = jax.block_until_ready(dice_loss(inputs, targets))
    ref = jax.block_until_ready(dice_loss_ref(inputs, targets))
    assert jnp.allclose(loss, ref, atol=1e-5, rtol=1e-5), (loss, ref)

    # Also exercise a larger, sharded, ragged (padded) case.
    shape2 = (2, 3, 120, 95)  # 68400 elems -> ragged tail, 2 shards
    x2 = jax.random.normal(k1, shape2, dtype=jnp.float32)
    t2 = (jax.random.uniform(k2, shape2) > 0.5).astype(jnp.float32)
    loss2 = jax.block_until_ready(dice_loss(x2, t2))
    ref2 = jax.block_until_ready(dice_loss_ref(x2, t2))
    assert jnp.allclose(loss2, ref2, atol=1e-5, rtol=1e-5), (loss2, ref2)

    print("KERNEL_OK")
</pallas_src>

<mosaic_0001>
module attributes {stable_mosaic.version = 11 : i64} {
  func.func @_dice_partial_kernel(%arg0: i32, %arg1: i32, %arg2: memref<16x128xf32, #tpu.memory_space<vmem>>, %arg3: memref<16x128xf32, #tpu.memory_space<vmem>>, %arg4: memref<1x3x8x128xf32, #tpu.memory_space<vmem>>) attributes {dimension_semantics = [#tpu.dimension_semantics<parallel>, #tpu.dimension_semantics<arbitrary>], iteration_bounds = array<i64: 1, 1>, scalar_prefetch = 0 : i64, scratch_operands = 0 : i64, tpu.core_type = #tpu.core_type<tc>, window_params = [{transform_indices = @transform_0, window_bounds = array<i64: 16, 128>}, {transform_indices = @transform_1, window_bounds = array<i64: 16, 128>}, {transform_indices = @transform_2, window_bounds = array<i64: 1, 3, 8, 128>}]} {
    %c0_i32 = arith.constant 0 : i32
    %0 = arith.cmpi eq, %arg1, %c0_i32 : i32
    %1 = arith.extui %0 : i1 to i32
    %c0_i32_0 = arith.constant 0 : i32
    %2 = arith.cmpi ne, %1, %c0_i32_0 : i32
    scf.if %2 {
      %cst_29 = arith.constant 0.000000e+00 : f32
      %35 = vector.broadcast %cst_29 : f32 to vector<1x3x8x128xf32>
      %c0_30 = arith.constant 0 : index
      %c0_31 = arith.constant 0 : index
      %c0_32 = arith.constant 0 : index
      %c0_33 = arith.constant 0 : index
      %36 = vector.load %arg4[%c0_30, %c0_31, %c0_32, %c0_33] : memref<1x3x8x128xf32, #tpu.memory_space<vmem>>, vector<1x3x8x128xf32>
      tpu.vector_store %arg4[%c0_30, %c0_31, %c0_32, %c0_33], %35 {strides = array<i32>} : memref<1x3x8x128xf32, #tpu.memory_space<vmem>>, vector<1x3x8x128xf32>,
    } else {
    }
    %c0 = arith.constant 0 : index
    %c0_1 = arith.constant 0 : index
    %3 = vector.load %arg2[%c0, %c0_1] : memref<16x128xf32, #tpu.memory_space<vmem>>, vector<16x128xf32>
    %c0_2 = arith.constant 0 : index
    %c0_3 = arith.constant 0 : index
    %4 = vector.load %arg3[%c0_2, %c0_3] : memref<16x128xf32, #tpu.memory_space<vmem>>, vector<16x128xf32>
    %5 = arith.negf %3 : vector<16x128xf32>
    %6 = math.exp %5 : vector<16x128xf32>
    %cst = arith.constant 1.000000e+00 : f32
    %7 = vector.broadcast %cst : f32 to vector<16x128xf32>
    %8 = arith.addf %7, %6 : vector<16x128xf32>
    %9 = arith.divf %7, %8 : vector<16x128xf32>
    %10 = arith.mulf %9, %4 : vector<16x128xf32>
    %c0_4 = arith.constant 0 : index
    %c0_5 = arith.constant 0 : index
    %c0_6 = arith.constant 0 : index
    %c0_7 = arith.constant 0 : index
    %11 = vector.load %arg4[%c0_4, %c0_5, %c0_6, %c0_7] : memref<1x3x8x128xf32, #tpu.memory_space<vmem>>, vector<1x1x8x128xf32>
    %12 = vector.shape_cast %11 : vector<1x1x8x128xf32> to vector<8x128xf32>
    %13 = vector.shape_cast %10 : vector<16x128xf32> to vector<2x8x128xf32>
    %cst_8 = arith.constant dense<0.000000e+00> : vector<8x128xf32>
    %14 = vector.multi_reduction <add>, %13, %cst_8 [0] : vector<2x8x128xf32> to vector<8x128xf32>
    %15 = arith.addf %12, %14 : vector<8x128xf32>
    %c0_9 = arith.constant 0 : index
    %c0_10 = arith.constant 0 : index
    %c0_11 = arith.constant 0 : index
    %c0_12 = arith.constant 0 : index
    %16 = vector.load %arg4[%c0_9, %c0_10, %c0_11, %c0_12] : memref<1x3x8x128xf32, #tpu.memory_space<vmem>>, vector<1x1x8x128xf32>
    %17 = vector.shape_cast %16 : vector<1x1x8x128xf32> to vector<8x128xf32>
    %18 = vector.shape_cast %15 : vector<8x128xf32> to vector<1x1x8x128xf32>
    tpu.vector_store %arg4[%c0_9, %c0_10, %c0_11, %c0_12], %18 {strides = array<i32>} : memref<1x3x8x128xf32, #tpu.memory_space<vmem>>, vector<1x1x8x128xf32>,
    %c0_13 = arith.constant 0 : index
    %c1 = arith.constant 1 : index
    %c0_14 = arith.constant 0 : index
    %c0_15 = arith.constant 0 : index
    %19 = vector.load %arg4[%c0_13, %c1, %c0_14, %c0_15] : memref<1x3x8x128xf32, #tpu.memory_space<vmem>>, vector<1x1x8x128xf32>
    %20 = vector.shape_cast %19 : vector<1x1x8x128xf32> to vector<8x128xf32>
    %21 = vector.shape_cast %9 : vector<16x128xf32> to vector<2x8x128xf32>
    %cst_16 = arith.constant dense<0.000000e+00> : vector<8x128xf32>
    %22 = vector.multi_reduction <add>, %21, %cst_16 [0] : vector<2x8x128xf32> to vector<8x128xf32>
    %23 = arith.addf %20, %22 : vector<8x128xf32>
    %c0_17 = arith.constant 0 : index
    %c1_18 = arith.constant 1 : index
    %c0_19 = arith.constant 0 : index
    %c0_20 = arith.constant 0 : index
    %24 = vector.load %arg4[%c0_17, %c1_18, %c0_19, %c0_20] : memref<1x3x8x128xf32, #tpu.memory_space<vmem>>, vector<1x1x8x128xf32>
    %25 = vector.shape_cast %24 : vector<1x1x8x128xf32> to vector<8x128xf32>
    %26 = vector.shape_cast %23 : vector<8x128xf32> to vector<1x1x8x128xf32>
    tpu.vector_store %arg4[%c0_17, %c1_18, %c0_19, %c0_20], %26 {strides = array<i32>} : memref<1x3x8x128xf32, #tpu.memory_space<vmem>>, vector<1x1x8x128xf32>,
    %c0_21 = arith.constant 0 : index
    %c2 = arith.constant 2 : index
    %c0_22 = arith.constant 0 : index
    %c0_23 = arith.constant 0 : index
    %27 = vector.load %arg4[%c0_21, %c2, %c0_22, %c0_23] : memref<1x3x8x128xf32, #tpu.memory_space<vmem>>, vector<1x1x8x128xf32>
    %28 = vector.shape_cast %27 : vector<1x1x8x128xf32> to vector<8x128xf32>
    %29 = vector.shape_cast %4 : vector<16x128xf32> to vector<2x8x128xf32>
    %cst_24 = arith.constant dense<0.000000e+00> : vector<8x128xf32>
    %30 = vector.multi_reduction <add>, %29, %cst_24 [0] : vector<2x8x128xf32> to vector<8x128xf32>
    %31 = arith.addf %28, %30 : vector<8x128xf32>
    %c0_25 = arith.constant 0 : index
    %c2_26 = arith.constant 2 : index
    %c0_27 = arith.constant 0 : index
    %c0_28 = arith.constant 0 : index
    %32 = vector.load %arg4[%c0_25, %c2_26, %c0_27, %c0_28] : memref<1x3x8x128xf32, #tpu.memory_space<vmem>>, vector<1x1x8x128xf32>
    %33 = vector.shape_cast %32 : vector<1x1x8x128xf32> to vector<8x128xf32>
    %34 = vector.shape_cast %31 : vector<8x128xf32> to vector<1x1x8x128xf32>
    tpu.vector_store %arg4[%c0_25, %c2_26, %c0_27, %c0_28], %34 {strides = array<i32>} : memref<1x3x8x128xf32, #tpu.memory_space<vmem>>, vector<1x1x8x128xf32>,
    return
  }
  func.func @transform_0(%arg0: i32, %arg1: i32) -> (i32, i32) {
    %c1_i32 = arith.constant 1 : i32
    %0 = arith.muli %arg0, %c1_i32 : i32
    %1 = arith.addi %0, %arg1 : i32
    %c0_i32 = arith.constant 0 : i32
    %c0_i32_0 = arith.constant 0 : i32
    return %1, %c0_i32 : i32, i32
  }
  func.func @transform_1(%arg0: i32, %arg1: i32) -> (i32, i32) {
    %c1_i32 = arith.constant 1 : i32
    %0 = arith.muli %arg0, %c1_i32 : i32
    %1 = arith.addi %0, %arg1 : i32
    %c0_i32 = arith.constant 0 : i32
    %c0_i32_0 = arith.constant 0 : i32
    return %1, %c0_i32 : i32, i32
  }
  func.func @transform_2(%arg0: i32, %arg1: i32) -> (i32, i32, i32, i32) {
    %c0_i32 = arith.constant 0 : i32
    %c0_i32_0 = arith.constant 0 : i32
    %c0_i32_1 = arith.constant 0 : i32
    %c0_i32_2 = arith.constant 0 : i32
    return %arg0, %c0_i32, %c0_i32_0, %c0_i32_1 : i32, i32, i32, i32
  }
}

</mosaic_0001>

<llo_original>
// kernel: tpu_custom_call.1
$region0: #{tpu_custom_call.1}
  #allocation0 [shape = 'u32[]', space=smem, size = 0x4, offset = 0x4, fixed_abs, tag = 'smem constant byte address 0x4 - core index']
  #allocation1 [shape = 'u32[144,128]{1,0:T(1,128)}', space=vmem, size = 0x12000, scoped, tag = 'internal scratch']
  %s0 = inlined_call_operand.hbm [shape: f32[16,128], index: 0, kind: input, shape index: {}]
  %s1 = inlined_call_operand.hbm [shape: f32[16,128], index: 1, kind: input, shape index: {}]
  %s2 = inlined_call_operand.hbm [shape: f32[1,3,8,128], index: 2, kind: output, shape index: {}]
  %s3 = sld [smem:[#allocation0]]
  $region30: #{tpu_custom_call.1} parent=0
    _
  %s5 = ssub.s32 1, %s3
  %s6 = scalar_select 0, %s5, %s3
  $region1: #{tpu_custom_call.1} parent=0
    #allocation2 [shape = 'u8[8192]{0}', space=vmem, size = 0x2000, scoped, tag = 'input window, operand 0, single buffered']
    #allocation3 [shape = 's32[1]{0}', space=sflag, size = 0x4, scoped, tag = 'scoped memory for tpu_custom_call.1']
    #allocation4 [shape = 's32[1]{0}', space=sflag, size = 0x4, scoped, tag = 'scoped memory for tpu_custom_call.1']
    #allocation5 [shape = 'u8[8192]{0}', space=vmem, size = 0x2000, scoped, tag = 'input window, operand 1, single buffered']
    #allocation6 [shape = 's32[1]{0}', space=sflag, size = 0x4, scoped, tag = 'scoped memory for tpu_custom_call.1']
    #allocation7 [shape = 'u8[12288]{0}', space=vmem, size = 0x3000, scoped, tag = 'output window, operand 0, single buffered']
    %7 = vsyncpa [#allocation3], 0
    %8 = vsyncpa [#allocation6], 0
    %9 = vsyncpa [#allocation4], 0
    // Predicated region
    $region2: #{tpu_custom_call.1} parent=1 // pred_check
      _
    $region3: #{tpu_custom_call.1} parent=1 // pred_check_branch
      %11 = sbr.rel (0) target = $region5
    $region4: #{tpu_custom_call.1} parent=1 // pred_region
      %s12 = sadd.s32 0, 0
      %s13 = smul.u32 2, %s12
      %s15 = ssub.s32 256, 256
      %16 = vsyncadd [#allocation3], %s15
      %s17 = smul.addr %s13, 128
      %s18 = scalar_lea.hbm %s0, %s17
      %s19 = sshll.u32 [#allocation2], 4
      %s20 = int_to_ptr.vmem [resolvable:$true] %s19
      %25 = dma.hbm_to_vmem [thread:$0]  %s18, 256, %s20, [#allocation3], 128, 128, 8
    $region5: #{tpu_custom_call.1} parent=1 // pred_fallthru
      _
    // Predicated region
    $region6: #{tpu_custom_call.1} parent=1 // pred_check
      _
    $region7: #{tpu_custom_call.1} parent=1 // pred_check_branch
      %27 = sbr.rel (0) target = $region9
    $region8: #{tpu_custom_call.1} parent=1 // pred_region
      %s28 = sadd.s32 0, 0
      %s29 = smul.u32 2, %s28
      %s31 = ssub.s32 256, 256
      %32 = vsyncadd [#allocation6], %s31
      %s33 = smul.addr %s29, 128
      %s34 = scalar_lea.hbm %s1, %s33
      %s35 = sshll.u32 [#allocation5], 4
      %s36 = int_to_ptr.vmem [resolvable:$true] %s35
      %41 = dma.hbm_to_vmem [thread:$0]  %s34, 256, %s36, [#allocation6], 128, 128, 8
    $region9: #{tpu_custom_call.1} parent=1 // pred_fallthru
      _
    // Predicated region
    $region10: #{tpu_custom_call.1} parent=1 // pred_check
      _
    $region11: #{tpu_custom_call.1} parent=1 // pred_check_branch
      %43 = sbr.rel (0) target = $region13
    $region12: #{tpu_custom_call.1} parent=1 // pred_region
      %44 = dma.done [#allocation3], 256
    $region13: #{tpu_custom_call.1} parent=1 // pred_fallthru
      _
    // Predicated region
    $region14: #{tpu_custom_call.1} parent=1 // pred_check
      _
    $region15: #{tpu_custom_call.1} parent=1 // pred_check_branch
      %46 = sbr.rel (0) target = $region17
    $region16: #{tpu_custom_call.1} parent=1 // pred_region
      %47 = dma.done [#allocation6], 256
    $region17: #{tpu_custom_call.1} parent=1 // pred_fallthru
      _
    %s48 = sadd.s32 0, 0
    %s49 = smul.u32 2, %s48
    %s50 = sadd.s32 0, 0
    %s51 = smul.u32 2, %s50
    %p52 = scmp.eq.s32.totalorder 0, 0
    // Predicated region
    $region18: #{tpu_custom_call.1} parent=1 // pred_check
      %p53 = pneg %p52
    $region19: #{tpu_custom_call.1} parent=1 // pred_check_branch
      %55 = sbr.rel (%p53) target = $region21
    $region20: #{tpu_custom_call.1} parent=1 // pred_region
      %56 = vst [vmem:[#allocation7] sm:$0xff] 0.0
      %57 = vst [vmem:[#allocation7 + $0x8] sm:$0xff] 0.0
      %58 = vst [vmem:[#allocation7 + $0x10] sm:$0xff] 0.0
    $region21: #{tpu_custom_call.1} parent=1 // pred_fallthru
      _
    %v59 = vld [vmem:[#allocation2] sm:$0xff]
    %v60 = vld [vmem:[#allocation2 + $0x8] sm:$0xff]
    %v61 = vld [vmem:[#allocation5] sm:$0xff]
    %v62 = vld [vmem:[#allocation5 + $0x8] sm:$0xff]
    %v63 = vxor.u32 %v59, 2147483648
    %v64 = vxor.u32 %v60, 2147483648
    %v65 = vmul.f32 %v63, 1.442695
    %v66 = vpow.pop %v65
    %v67 = vmul.f32 %v64, 1.442695
    %v68 = vpow.pop %v67
    %v69 = vadd.f32 %v66, 1.0
    %v70 = vadd.f32 %v68, 1.0
    %v71 = vrcp.pop %v69
    %v72 = vmul.f32 1.0, %v71
    %v73 = vrcp.pop %v70
    %v74 = vmul.f32 1.0, %v73
    %v75 = vmul.f32 %v72, %v61
    %v76 = vmul.f32 %v74, %v62
    %v77 = vld [vmem:[#allocation7] sm:$0xff]
    %v78 = vadd.f32 %v75, %v76
    %v79 = vadd.f32 %v77, %v78
    %80 = vst [vmem:[#allocation7] sm:$0xff] %v79
    %s81 = scalar_lea.vmem [#allocation7], 8
    %v82 = vld [vmem:[%s81] sm:$0xff]
    %v83 = vadd.f32 %v72, %v74
    %v84 = vadd.f32 %v82, %v83
    %85 = vst [vmem:[%s81] sm:$0xff] %v84
    %s86 = scalar_lea.vmem [#allocation7], 16
    %v87 = vld [vmem:[%s86] sm:$0xff]
    %v88 = vadd.f32 %v61, %v62
    %v89 = vadd.f32 %v87, %v88
    %90 = vst [vmem:[%s86] sm:$0xff] %v89
    // Predicated region
    $region22: #{tpu_custom_call.1} parent=1 // pred_check
      _
    $region23: #{tpu_custom_call.1} parent=1 // pred_check_branch
      %92 = sbr.rel (0) target = $region25
    $region24: #{tpu_custom_call.1} parent=1 // pred_region
      %s94 = ssub.s32 384, 384
      %95 = vsyncadd [#allocation4], %s94
      %s96 = sshll.u32 [#allocation7], 4
      %s97 = int_to_ptr.vmem [resolvable:$true] %s96
      %102 = dma.vmem_to_hbm [thread:$0]  %s97, 384, %s2, [#allocation4], 128, 128, 8
    $region25: #{tpu_custom_call.1} parent=1 // pred_fallthru
      _
    // Predicated region
    $region26: #{tpu_custom_call.1} parent=1 // pred_check
      _
    $region27: #{tpu_custom_call.1} parent=1 // pred_check_branch
      %104 = sbr.rel (0) target = $region29
    $region28: #{tpu_custom_call.1} parent=1 // pred_region
      %105 = dma.done [#allocation4], 384
    $region29: #{tpu_custom_call.1} parent=1 // pred_fallthru
      _
    %106 = vsyncpa [#allocation3], 1
    %107 = vsyncpa [#allocation6], 1
    %108 = vsyncpa [#allocation4], 1

</llo_original>
